<compile_context>
chip_gen: v5e
topology: v5e:2x2
jax: 0.10.0
libtpu: 0.0.40
codegen_flags: <defaults>
</compile_context>

<pallas_src>
import functools

import jax
import jax.numpy as jnp
from jax.experimental import pallas as pl
from jax.experimental.pallas import tpu as pltpu

EPS = 1e-07
LOG_STD_MAX = 2.0
LOG_STD_MIN = -5.0
MEAN_MAX = 9.0
MEAN_MIN = -9.0

_TRANS_B_DIMS = (((1,), (1,)), ((), ()))  # contract lhs dim 1 with rhs dim 1 (a @ b.T)


def _round_up(n, m):
    return ((n + m - 1) // m) * m


def _cdiv(a, b):
    return -(-a // b)


def _choose_tile(batch, tb):
    """Pick the batch tile. Guarantees >=2 grid blocks for large batches (v7x
    megacore) while keeping single-block small batches cheap."""
    b8 = _round_up(batch, 8)
    if b8 <= 2 * tb:
        if b8 >= 512:
            # Split across >= 2 grid blocks; multiple of 128 keeps multi-block
            # lane dims legal and stores dense.
            return _round_up(_cdiv(b8, 2), 128)
        return b8  # single block; tile == padded batch (lane dim == full array)
    return tb


def _actor_kernel(x_ref, eps_ref, w1_ref, b1_ref, w2_ref, b2_ref, wht_ref, bht_ref,
                  out_ref, *, action_dim, head_stride):
    A = action_dim
    st = head_stride

    # fc1 + ReLU  (bf16 operands, f32 accumulation on the MXU)
    h = jnp.dot(x_ref[...], w1_ref[...], preferred_element_type=jnp.float32)
    h = jnp.maximum(h + b1_ref[...], 0.0)

    # fc2 + ReLU
    h = jnp.dot(h.astype(jnp.bfloat16), w2_ref[...], preferred_element_type=jnp.float32)
    h = jnp.maximum(h + b2_ref[...], 0.0)

    # Fused mu / log_sigma heads, TRANSPOSED: (2*st, 256) @ (TB, 256)^T -> (2*st, TB)
    # Batch now lives on lanes -> lane-dense epilogue + outputs.
    heads_t = jax.lax.dot_general(
        wht_ref[...], h.astype(jnp.bfloat16),
        dimension_numbers=_TRANS_B_DIMS,
        preferred_element_type=jnp.float32) + bht_ref[...]

    mu = jnp.clip(heads_t[0:A, :], MEAN_MIN, MEAN_MAX)                 # (A, TB)
    log_sigma = jnp.clip(heads_t[st:st + A, :], LOG_STD_MIN, LOG_STD_MAX)
    sigma = jnp.exp(log_sigma)

    # reparameterized sample + tanh squash
    eps = eps_ref[...]                                                 # (A, TB)
    z = mu + sigma * eps
    action = jnp.tanh(z)

    # Normal(mu, sigma).log_prob(z) with z = mu + sigma*eps
    log_normal = -0.5 * (eps * eps) - log_sigma - 0.5 * jnp.log(2.0 * jnp.pi)
    # log(1 - tanh(z)^2) = 2*(log2 - |z| - log(1 + exp(-2|z|)))  (exp arg <= 0)
    az = jnp.abs(z)
    log_det = 2.0 * (jnp.log(2.0) - az - jnp.log(1.0 + jnp.exp(-2.0 * az)))
    logp = log_normal - log_det                                        # (A, TB)

    # Packed lane-dense output slab: action rows [0,A), mode rows [st, st+A),
    # logp_pi row 2*st. Remaining rows are zeroed padding (sliced off outside).
    out_ref[...] = jnp.zeros_like(out_ref)
    out_ref[0:A, :] = action
    out_ref[st:st + A, :] = jnp.tanh(mu)
    out_ref[2 * st:2 * st + 1, :] = jnp.sum(logp, axis=0, keepdims=True)


def prepare_params(params):
    """One-time packing of the PyTorch-style params into kernel-ready tensors.

    Call this ONCE (outside the hot loop) and pass the result to actor_forward.
    """
    A = params["w_mu"].shape[1]
    H = params["w1"].shape[1]
    stride = _round_up(max(A, 1), 8)  # sublane-tile aligned head stride

    # Transposed, fused head weight/bias: mu rows [0, A), log_sigma rows [stride, stride+A)
    wht = jnp.zeros((2 * stride, H), jnp.float32)
    wht = wht.at[:A, :].set(params["w_mu"].T)
    wht = wht.at[stride:stride + A, :].set(params["w_sigma"].T)
    bht = jnp.zeros((2 * stride, 1), jnp.float32)
    bht = bht.at[:A, 0].set(params["b_mu"].reshape(-1))
    bht = bht.at[stride:stride + A, 0].set(params["b_sigma"].reshape(-1))

    return {
        "w1": params["w1"].astype(jnp.bfloat16),
        "b1": params["b1"].reshape(1, -1).astype(jnp.float32),
        "w2": params["w2"].astype(jnp.bfloat16),
        "b2": params["b2"].reshape(1, -1).astype(jnp.float32),
        "wht": wht.astype(jnp.bfloat16),
        "bht": bht,
        "action_dim": int(A),
        "head_stride": int(stride),
        "hidden": int(H),
    }


def actor_forward(state, eps, prep, *, tb=1024):
    """state: (B, state_dim) f32; eps: (B, action_dim) standard-normal noise.
    prep: output of prepare_params. Returns (action, logp_pi, a_tanh_mode)."""
    B, S = state.shape
    A = prep["action_dim"]
    st = prep["head_stride"]
    H = prep["hidden"]
    out_rows = _round_up(2 * st + 1, 8)

    TB = _choose_tile(B, tb)
    B_pad = _round_up(B, TB)

    x = state.astype(jnp.bfloat16)          # halve the streamed x DMA
    eps_t = eps.T.astype(jnp.float32)       # (A, B): batch on lanes
    if B_pad != B:
        x = jnp.pad(x, ((0, B_pad - B), (0, 0)))
        eps_t = jnp.pad(eps_t, ((0, 0), (0, B_pad - B)))

    nblk = B_pad // TB
    resident = lambda a: pl.BlockSpec(a.shape, lambda i: (0, 0))  # VMEM-resident

    kernel = functools.partial(_actor_kernel, action_dim=A, head_stride=st)

    flops = 2 * B_pad * (S * H + H * H + H * 2 * st)
    transcendentals = 5 * B_pad * A  # exp, 2x tanh, exp+log (softplus)
    bytes_accessed = (2 * B_pad * S                       # x (bf16) in
                      + 4 * A * B_pad                     # eps in
                      + 4 * out_rows * B_pad              # packed output
                      + 2 * (S * H + H * H + 2 * st * H)  # bf16 weights
                      + 4 * (2 * H + 2 * st))             # f32 biases

    out = pl.pallas_call(
        kernel,
        grid=(nblk,),
        out_shape=jax.ShapeDtypeStruct((out_rows, B_pad), jnp.float32),
        in_specs=[
            pl.BlockSpec((TB, S), lambda i: (i, 0)),    # x: batch-tiled rows
            pl.BlockSpec((A, TB), lambda i: (0, i)),    # eps_t: batch-tiled lanes
            resident(prep["w1"]), resident(prep["b1"]),
            resident(prep["w2"]), resident(prep["b2"]),
            resident(prep["wht"]), resident(prep["bht"]),
        ],
        out_specs=pl.BlockSpec((out_rows, TB), lambda i: (0, i)),
        compiler_params=pltpu.CompilerParams(
            dimension_semantics=("parallel",),
        ),
        cost_estimate=pl.CostEstimate(
            flops=flops,
            transcendentals=transcendentals,
            bytes_accessed=bytes_accessed,
        ),
    )(x, eps_t, prep["w1"], prep["b1"], prep["w2"], prep["b2"], prep["wht"], prep["bht"])

    action = out[0:A, :B].T
    a_tanh_mode = out[st:st + A, :B].T
    logp_pi = out[2 * st, :B]
    return action, logp_pi, a_tanh_mode


def init_params(key, state_dim, action_dim, hidden=256):
    """PyTorch nn.Linear-style U(+-1/sqrt(fan_in)) init; weights stored (in, out)."""
    ks = jax.random.split(key, 8)

    def lin(kw, kb, fan_in, fan_out):
        bound = 1.0 / jnp.sqrt(jnp.float32(fan_in))
        w = jax.random.uniform(kw, (fan_in, fan_out), jnp.float32, -bound, bound)
        b = jax.random.uniform(kb, (1, fan_out), jnp.float32, -bound, bound)
        return w, b

    w1, b1 = lin(ks[0], ks[1], state_dim, hidden)
    w2, b2 = lin(ks[2], ks[3], hidden, hidden)
    w_mu, b_mu = lin(ks[4], ks[5], hidden, action_dim)
    w_sigma, b_sigma = lin(ks[6], ks[7], hidden, action_dim)
    return {"w1": w1, "b1": b1, "w2": w2, "b2": b2,
            "w_mu": w_mu, "b_mu": b_mu, "w_sigma": w_sigma, "b_sigma": b_sigma}


def _reference(state, eps, p, *, matmul_dtype=jnp.float32):
    """Pure-JAX Actor.forward reference; matmul_dtype mimics the kernel's bf16 operands."""
    c = lambda a: a.astype(matmul_dtype)
    dot = lambda a, b: jnp.dot(c(a), c(b), preferred_element_type=jnp.float32)
    h = jax.nn.relu(dot(state, p["w1"]) + p["b1"])
    h = jax.nn.relu(dot(h, p["w2"]) + p["b2"])
    mu = jnp.clip(dot(h, p["w_mu"]) + p["b_mu"], MEAN_MIN, MEAN_MAX)
    log_sigma = jnp.clip(dot(h, p["w_sigma"]) + p["b_sigma"], LOG_STD_MIN, LOG_STD_MAX)
    sigma = jnp.exp(log_sigma)
    z = mu + sigma * eps
    action = jnp.tanh(z)
    log_normal = -0.5 * (eps * eps) - log_sigma - 0.5 * jnp.log(2.0 * jnp.pi)
    log_det = 2.0 * (jnp.log(2.0) - z - jax.nn.softplus(-2.0 * z))
    logp = jnp.sum(log_normal - log_det, axis=-1)
    return action, logp, jnp.tanh(mu)


if __name__ == "__main__":
    key = jax.random.PRNGKey(0)
    k_param, k_state, k_eps = jax.random.split(key, 3)

    batch, state_dim, action_dim = 10, 32, 6   # non-multiple-of-8 batch exercises padding
    params = init_params(k_param, state_dim, action_dim)
    prep = prepare_params(params)              # one-time weight packing (hoisted)
    state = jax.random.normal(k_state, (batch, state_dim), jnp.float32)
    eps = jax.random.normal(k_eps, (batch, action_dim), jnp.float32)

    action, logp_pi, a_tanh_mode = actor_forward(state, eps, prep)
    (action, logp_pi, a_tanh_mode) = jax.block_until_ready((action, logp_pi, a_tanh_mode))

    # Compare against a reference that uses the same bf16-operand / f32-accumulate matmuls.
    ref_a, ref_lp, ref_m = _reference(state, eps, params, matmul_dtype=jnp.bfloat16)
    assert action.shape == (batch, action_dim)
    assert logp_pi.shape == (batch,)
    assert a_tanh_mode.shape == (batch, action_dim)
    assert jnp.allclose(action, ref_a, atol=2e-3, rtol=2e-3)
    assert jnp.allclose(a_tanh_mode, ref_m, atol=2e-3, rtol=2e-3)
    assert jnp.allclose(logp_pi, ref_lp, atol=5e-3, rtol=5e-3)

    print("KERNEL_OK")
</pallas_src>

<mosaic_0001>
module attributes {stable_mosaic.version = 11 : i64} {
  func.func @_actor_kernel(%arg0: i32, %arg1: memref<16x32xbf16, #tpu.memory_space<vmem>>, %arg2: memref<6x16xf32, #tpu.memory_space<vmem>>, %arg3: memref<32x256xbf16, #tpu.memory_space<vmem>>, %arg4: memref<1x256xf32, #tpu.memory_space<vmem>>, %arg5: memref<256x256xbf16, #tpu.memory_space<vmem>>, %arg6: memref<1x256xf32, #tpu.memory_space<vmem>>, %arg7: memref<16x256xbf16, #tpu.memory_space<vmem>>, %arg8: memref<16x1xf32, #tpu.memory_space<vmem>>, %arg9: memref<24x16xf32, #tpu.memory_space<vmem>>) attributes {dimension_semantics = [#tpu.dimension_semantics<parallel>], iteration_bounds = array<i64: 1>, scalar_prefetch = 0 : i64, scratch_operands = 0 : i64, tpu.core_type = #tpu.core_type<tc>, window_params = [{transform_indices = @transform_0, window_bounds = array<i64: 16, 32>}, {transform_indices = @transform_1, window_bounds = array<i64: 6, 16>}, {pipeline_mode = #tpu.pipeline_mode<synchronous>, transform_indices = @transform_2, window_bounds = array<i64: 32, 256>}, {pipeline_mode = #tpu.pipeline_mode<synchronous>, transform_indices = @transform_3, window_bounds = array<i64: 1, 256>}, {pipeline_mode = #tpu.pipeline_mode<synchronous>, transform_indices = @transform_4, window_bounds = array<i64: 256, 256>}, {pipeline_mode = #tpu.pipeline_mode<synchronous>, transform_indices = @transform_5, window_bounds = array<i64: 1, 256>}, {pipeline_mode = #tpu.pipeline_mode<synchronous>, transform_indices = @transform_6, window_bounds = array<i64: 16, 256>}, {pipeline_mode = #tpu.pipeline_mode<synchronous>, transform_indices = @transform_7, window_bounds = array<i64: 16, 1>}, {transform_indices = @transform_8, window_bounds = array<i64: 24, 16>}]} {
    %c0 = arith.constant 0 : index
    %c0_0 = arith.constant 0 : index
    %0 = vector.load %arg1[%c0, %c0_0] : memref<16x32xbf16, #tpu.memory_space<vmem>>, vector<16x32xbf16>
    %c0_1 = arith.constant 0 : index
    %c0_2 = arith.constant 0 : index
    %1 = vector.load %arg3[%c0_1, %c0_2] : memref<32x256xbf16, #tpu.memory_space<vmem>>, vector<32x256xbf16>
    %cst = arith.constant dense<0.000000e+00> : vector<16x256xf32>
    %2 = tpu.matmul %0, %1, %cst {dimension_numbers = #tpu.dot_dimension_numbers<[1], [0], [0], [1], [0, 0, 1, 1], [], []>} : vector<16x32xbf16>, vector<32x256xbf16>, vector<16x256xf32> -> vector<16x256xf32>
    %c0_3 = arith.constant 0 : index
    %c0_4 = arith.constant 0 : index
    %3 = vector.load %arg4[%c0_3, %c0_4] : memref<1x256xf32, #tpu.memory_space<vmem>>, vector<1x256xf32>
    %4 = vector.broadcast %3 : vector<1x256xf32> to vector<16x256xf32>
    %5 = arith.addf %2, %4 : vector<16x256xf32>
    %cst_5 = arith.constant 0.000000e+00 : f32
    %6 = vector.broadcast %cst_5 : f32 to vector<16x256xf32>
    %7 = arith.maximumf %5, %6 : vector<16x256xf32>
    %8 = arith.truncf %7 : vector<16x256xf32> to vector<16x256xbf16>
    %c0_6 = arith.constant 0 : index
    %c0_7 = arith.constant 0 : index
    %9 = vector.load %arg5[%c0_6, %c0_7] : memref<256x256xbf16, #tpu.memory_space<vmem>>, vector<256x256xbf16>
    %cst_8 = arith.constant dense<0.000000e+00> : vector<16x256xf32>
    %10 = tpu.matmul %8, %9, %cst_8 {dimension_numbers = #tpu.dot_dimension_numbers<[1], [0], [0], [1], [0, 0, 1, 1], [], []>} : vector<16x256xbf16>, vector<256x256xbf16>, vector<16x256xf32> -> vector<16x256xf32>
    %c0_9 = arith.constant 0 : index
    %c0_10 = arith.constant 0 : index
    %11 = vector.load %arg6[%c0_9, %c0_10] : memref<1x256xf32, #tpu.memory_space<vmem>>, vector<1x256xf32>
    %12 = vector.broadcast %11 : vector<1x256xf32> to vector<16x256xf32>
    %13 = arith.addf %10, %12 : vector<16x256xf32>
    %cst_11 = arith.constant 0.000000e+00 : f32
    %14 = vector.broadcast %cst_11 : f32 to vector<16x256xf32>
    %15 = arith.maximumf %13, %14 : vector<16x256xf32>
    %c0_12 = arith.constant 0 : index
    %c0_13 = arith.constant 0 : index
    %16 = vector.load %arg7[%c0_12, %c0_13] : memref<16x256xbf16, #tpu.memory_space<vmem>>, vector<16x256xbf16>
    %17 = arith.truncf %15 : vector<16x256xf32> to vector<16x256xbf16>
    %cst_14 = arith.constant dense<0.000000e+00> : vector<16x16xf32>
    %18 = tpu.matmul %16, %17, %cst_14 {dimension_numbers = #tpu.dot_dimension_numbers<[1], [1], [0], [0], [0, 0, 1, 0], [], []>} : vector<16x256xbf16>, vector<16x256xbf16>, vector<16x16xf32> -> vector<16x16xf32>
    %c0_15 = arith.constant 0 : index
    %c0_16 = arith.constant 0 : index
    %19 = vector.load %arg8[%c0_15, %c0_16] : memref<16x1xf32, #tpu.memory_space<vmem>>, vector<16x1xf32>
    %20 = vector.broadcast %19 : vector<16x1xf32> to vector<16x16xf32>
    %21 = arith.addf %18, %20 : vector<16x16xf32>
    %22 = vector.extract_strided_slice %21 {offsets = [0, 0], sizes = [6, 16], strides = [1, 1]} : vector<16x16xf32> to vector<6x16xf32>
    %cst_17 = arith.constant -9.000000e+00 : f32
    %cst_18 = arith.constant 9.000000e+00 : f32
    %23 = vector.broadcast %cst_17 : f32 to vector<6x16xf32>
    %24 = arith.maximumf %23, %22 : vector<6x16xf32>
    %25 = vector.broadcast %cst_18 : f32 to vector<6x16xf32>
    %26 = arith.minimumf %25, %24 : vector<6x16xf32>
    %27 = vector.extract_strided_slice %21 {offsets = [8, 0], sizes = [6, 16], strides = [1, 1]} : vector<16x16xf32> to vector<6x16xf32>
    %cst_19 = arith.constant -5.000000e+00 : f32
    %cst_20 = arith.constant 2.000000e+00 : f32
    %28 = vector.broadcast %cst_19 : f32 to vector<6x16xf32>
    %29 = arith.maximumf %28, %27 : vector<6x16xf32>
    %30 = vector.broadcast %cst_20 : f32 to vector<6x16xf32>
    %31 = arith.minimumf %30, %29 : vector<6x16xf32>
    %32 = math.exp %31 : vector<6x16xf32>
    %c0_21 = arith.constant 0 : index
    %c0_22 = arith.constant 0 : index
    %33 = vector.load %arg2[%c0_21, %c0_22] : memref<6x16xf32, #tpu.memory_space<vmem>>, vector<6x16xf32>
    %34 = arith.mulf %32, %33 : vector<6x16xf32>
    %35 = arith.addf %26, %34 : vector<6x16xf32>
    %36 = math.tanh %35 : vector<6x16xf32>
    %37 = arith.mulf %33, %33 : vector<6x16xf32>
    %cst_23 = arith.constant -5.000000e-01 : f32
    %38 = vector.broadcast %cst_23 : f32 to vector<6x16xf32>
    %39 = arith.mulf %38, %37 : vector<6x16xf32>
    %40 = arith.subf %39, %31 : vector<6x16xf32>
    %cst_24 = arith.constant 6.28318548 : f32
    %41 = math.log %cst_24 : f32
    %cst_25 = arith.constant 5.000000e-01 : f32
    %42 = arith.mulf %cst_25, %41 : f32
    %43 = vector.broadcast %42 : f32 to vector<6x16xf32>
    %44 = arith.subf %40, %43 : vector<6x16xf32>
    %45 = math.absf %35 : vector<6x16xf32>
    %cst_26 = arith.constant 2.000000e+00 : f32
    %46 = math.log %cst_26 : f32
    %47 = vector.broadcast %46 : f32 to vector<6x16xf32>
    %48 = arith.subf %47, %45 : vector<6x16xf32>
    %cst_27 = arith.constant -2.000000e+00 : f32
    %49 = vector.broadcast %cst_27 : f32 to vector<6x16xf32>
    %50 = arith.mulf %49, %45 : vector<6x16xf32>
    %51 = math.exp %50 : vector<6x16xf32>
    %cst_28 = arith.constant 1.000000e+00 : f32
    %52 = vector.broadcast %cst_28 : f32 to vector<6x16xf32>
    %53 = arith.addf %52, %51 : vector<6x16xf32>
    %54 = math.log %53 : vector<6x16xf32>
    %55 = arith.subf %48, %54 : vector<6x16xf32>
    %cst_29 = arith.constant 2.000000e+00 : f32
    %56 = vector.broadcast %cst_29 : f32 to vector<6x16xf32>
    %57 = arith.mulf %56, %55 : vector<6x16xf32>
    %58 = arith.subf %44, %57 : vector<6x16xf32>
    %cst_30 = arith.constant 0.000000e+00 : f32
    %59 = vector.broadcast %cst_30 : f32 to vector<24x16xf32>
    %c0_31 = arith.constant 0 : index
    %c0_32 = arith.constant 0 : index
    %60 = vector.load %arg9[%c0_31, %c0_32] : memref<24x16xf32, #tpu.memory_space<vmem>>, vector<24x16xf32>
    tpu.vector_store %arg9[%c0_31, %c0_32], %59 {strides = array<i32>} : memref<24x16xf32, #tpu.memory_space<vmem>>, vector<24x16xf32>,
    %c0_33 = arith.constant 0 : index
    %c0_34 = arith.constant 0 : index
    %61 = vector.load %arg9[%c0_33, %c0_34] : memref<24x16xf32, #tpu.memory_space<vmem>>, vector<6x16xf32>
    tpu.vector_store %arg9[%c0_33, %c0_34], %36 {strides = array<i32>} : memref<24x16xf32, #tpu.memory_space<vmem>>, vector<6x16xf32>,
    %62 = math.tanh %26 : vector<6x16xf32>
    %c8 = arith.constant 8 : index
    %c0_35 = arith.constant 0 : index
    %63 = vector.load %arg9[%c8, %c0_35] : memref<24x16xf32, #tpu.memory_space<vmem>>, vector<6x16xf32>
    tpu.vector_store %arg9[%c8, %c0_35], %62 {strides = array<i32>} : memref<24x16xf32, #tpu.memory_space<vmem>>, vector<6x16xf32>,
    %cst_36 = arith.constant dense<0.000000e+00> : vector<16xf32>
    %64 = vector.multi_reduction <add>, %58, %cst_36 [0] : vector<6x16xf32> to vector<16xf32>
    %65 = vector.shape_cast %64 : vector<16xf32> to vector<1x16xf32>
    %c16 = arith.constant 16 : index
    %c0_37 = arith.constant 0 : index
    %66 = vector.load %arg9[%c16, %c0_37] : memref<24x16xf32, #tpu.memory_space<vmem>>, vector<1x16xf32>
    tpu.vector_store %arg9[%c16, %c0_37], %65 {strides = array<i32>} : memref<24x16xf32, #tpu.memory_space<vmem>>, vector<1x16xf32>,
    return
  }
  func.func @transform_0(%arg0: i32) -> (i32, i32) {
    %c0_i32 = arith.constant 0 : i32
    %c0_i32_0 = arith.constant 0 : i32
    return %arg0, %c0_i32 : i32, i32
  }
  func.func @transform_1(%arg0: i32) -> (i32, i32) {
    %c0_i32 = arith.constant 0 : i32
    %c0_i32_0 = arith.constant 0 : i32
    return %c0_i32, %arg0 : i32, i32
  }
  func.func @transform_2(%arg0: i32) -> (i32, i32) {
    %c0_i32 = arith.constant 0 : i32
    %c0_i32_0 = arith.constant 0 : i32
    %c0_i32_1 = arith.constant 0 : i32
    return %c0_i32, %c0_i32_0 : i32, i32
  }
  func.func @transform_3(%arg0: i32) -> (i32, i32) {
    %c0_i32 = arith.constant 0 : i32
    %c0_i32_0 = arith.constant 0 : i32
    %c0_i32_1 = arith.constant 0 : i32
    return %c0_i32, %c0_i32_0 : i32, i32
  }
  func.func @transform_4(%arg0: i32) -> (i32, i32) {
    %c0_i32 = arith.constant 0 : i32
    %c0_i32_0 = arith.constant 0 : i32
    %c0_i32_1 = arith.constant 0 : i32
    return %c0_i32, %c0_i32_0 : i32, i32
  }
  func.func @transform_5(%arg0: i32) -> (i32, i32) {
    %c0_i32 = arith.constant 0 : i32
    %c0_i32_0 = arith.constant 0 : i32
    %c0_i32_1 = arith.constant 0 : i32
    return %c0_i32, %c0_i32_0 : i32, i32
  }
  func.func @transform_6(%arg0: i32) -> (i32, i32) {
    %c0_i32 = arith.constant 0 : i32
    %c0_i32_0 = arith.constant 0 : i32
    %c0_i32_1 = arith.constant 0 : i32
    return %c0_i32, %c0_i32_0 : i32, i32
  }
  func.func @transform_7(%arg0: i32) -> (i32, i32) {
    %c0_i32 = arith.constant 0 : i32
    %c0_i32_0 = arith.constant 0 : i32
    %c0_i32_1 = arith.constant 0 : i32
    return %c0_i32, %c0_i32_0 : i32, i32
  }
  func.func @transform_8(%arg0: i32) -> (i32, i32) {
    %c0_i32 = arith.constant 0 : i32
    %c0_i32_0 = arith.constant 0 : i32
    return %c0_i32, %arg0 : i32, i32
  }
}

</mosaic_0001>

<llo_original>
// kernel: tpu_custom_call.1
$region0: #{tpu_custom_call.1}
  #allocation0 [shape = 'u32[]', space=smem, size = 0x4, offset = 0x4, fixed_abs, tag = 'smem constant byte address 0x4 - core index']
  #allocation1 [shape = 'u32[72,128]{1,0:T(1,128)}', space=vmem, size = 0x9000, scoped, tag = 'internal scratch']
  %s0 = inlined_call_operand.hbm [shape: bf16[16,32], index: 0, kind: input, shape index: {}]
  %s1 = inlined_call_operand.hbm [shape: f32[6,16], index: 1, kind: input, shape index: {}]
  %s2 = inlined_call_operand.hbm [shape: bf16[32,256], index: 2, kind: input, shape index: {}]
  %s3 = inlined_call_operand.vmem [shape: f32[1,256], index: 3, kind: input, shape index: {}]
  %s4 = inlined_call_operand.hbm [shape: bf16[256,256], index: 4, kind: input, shape index: {}]
  %s5 = inlined_call_operand.vmem [shape: f32[1,256], index: 5, kind: input, shape index: {}]
  %s6 = inlined_call_operand.vmem [shape: bf16[16,256], index: 6, kind: input, shape index: {}]
  %s7 = inlined_call_operand.vmem [shape: f32[16,1], index: 7, kind: input, shape index: {}]
  %s8 = inlined_call_operand.vmem [shape: f32[24,16], index: 8, kind: output, shape index: {}]
  %s9 = sld [smem:[#allocation0]]
  $region58: #{tpu_custom_call.1} parent=0
    _
  %s11 = ssub.s32 1, %s9
  %s12 = scalar_select 0, %s11, %s9
  $region1: #{tpu_custom_call.1} parent=0
    #allocation2 [shape = 'u8[4096]{0}', space=vmem, size = 0x1000, scoped, tag = 'input window, operand 0, single buffered']
    #allocation3 [shape = 's32[1]{0}', space=sflag, size = 0x4, scoped, tag = 'scoped memory for tpu_custom_call.1']
    #allocation4 [shape = 'u8[4096]{0}', space=vmem, size = 0x1000, scoped, tag = 'input window, operand 1, single buffered']
    #allocation5 [shape = 's32[1]{0}', space=sflag, size = 0x4, scoped, tag = 'scoped memory for tpu_custom_call.1']
    #allocation6 [shape = 'u8[16384]{0}', space=vmem, size = 0x4000, scoped, tag = 'input window, operand 2, single buffered']
    #allocation7 [shape = 'u8[131072]{0}', space=vmem, size = 0x20000, scoped, tag = 'input window, operand 4, single buffered']
    #allocation8 [shape = 's32[1]{0}', space=sflag, size = 0x4, scoped, tag = 'scoped memory for tpu_custom_call.1']
    %13 = vsyncpa [#allocation3], 0
    %14 = vsyncpa [#allocation5], 0
    %15 = vsyncpa [#allocation8], 0
    // Predicated region
    $region2: #{tpu_custom_call.1} parent=1 // pred_check
      _
    $region3: #{tpu_custom_call.1} parent=1 // pred_check_branch
      %17 = sbr.rel (0) target = $region5
    $region4: #{tpu_custom_call.1} parent=1 // pred_region
      %19 = vsyncadd [#allocation3], 0
      %s20 = sshll.u32 %s0, 4
      %s21 = int_to_ptr.hbm [resolvable:$true] %s20
      %s22 = sshll.u32 [#allocation2], 4
      %s23 = int_to_ptr.vmem [resolvable:$true] %s22
      %28 = dma.hbm_to_vmem [thread:$0]  %s21, 128, %s23, [#allocation3], 64, 64, 4
    $region5: #{tpu_custom_call.1} parent=1 // pred_fallthru
      _
    // Predicated region
    $region6: #{tpu_custom_call.1} parent=1 // pred_check
      _
    $region7: #{tpu_custom_call.1} parent=1 // pred_check_branch
      %30 = sbr.rel (0) target = $region9
    $region8: #{tpu_custom_call.1} parent=1 // pred_region
      %32 = vsyncadd [#allocation5], 0
      %s34 = sshll.u32 %s1, 4
      %s35 = int_to_ptr.hbm [resolvable:$true] %s34
      %s36 = sshll.u32 [#allocation4], 4
      %s37 = int_to_ptr.vmem [resolvable:$true] %s36
      %39 = dma.hbm_to_vmem [thread:$0]  %s35, 128, %s37, [#allocation5]
    $region9: #{tpu_custom_call.1} parent=1 // pred_fallthru
      _
    // Predicated region
    $region10: #{tpu_custom_call.1} parent=1 // pred_check
      _
    $region11: #{tpu_custom_call.1} parent=1 // pred_check_branch
      %41 = sbr.rel (0) target = $region13
    $region12: #{tpu_custom_call.1} parent=1 // pred_region
      %43 = vsyncadd [#allocation5], 0
      %s44 = sshll.u32 %s2, 4
      %s45 = int_to_ptr.hbm [resolvable:$true] %s44
      %s46 = sshll.u32 [#allocation6], 4
      %s47 = int_to_ptr.vmem [resolvable:$true] %s46
      %52 = dma.hbm_to_vmem [thread:$0]  %s45, 512, %s47, [#allocation5], 128, 128, 8
    $region13: #{tpu_custom_call.1} parent=1 // pred_fallthru
      _
    // Predicated region
    $region14: #{tpu_custom_call.1} parent=1 // pred_check
      _
    $region15: #{tpu_custom_call.1} parent=1 // pred_check_branch
      %54 = sbr.rel (0) target = $region17
    $region16: #{tpu_custom_call.1} parent=1 // pred_region
      _
    $region17: #{tpu_custom_call.1} parent=1 // pred_fallthru
      _
    // Predicated region
    $region18: #{tpu_custom_call.1} parent=1 // pred_check
      _
    $region19: #{tpu_custom_call.1} parent=1 // pred_check_branch
      %56 = sbr.rel (0) target = $region21
    $region20: #{tpu_custom_call.1} parent=1 // pred_region
      %58 = vsyncadd [#allocation8], 0
      %s59 = sshll.u32 %s4, 4
      %s60 = int_to_ptr.hbm [resolvable:$true] %s59
      %s61 = sshll.u32 [#allocation7], 4
      %s62 = int_to_ptr.vmem [resolvable:$true] %s61
      %67 = dma.hbm_to_vmem [thread:$0]  %s60, 4096, %s62, [#allocation8], 128, 128, 8
    $region21: #{tpu_custom_call.1} parent=1 // pred_fallthru
      _
    // Predicated region
    $region22: #{tpu_custom_call.1} parent=1 // pred_check
      _
    $region23: #{tpu_custom_call.1} parent=1 // pred_check_branch
      %69 = sbr.rel (0) target = $region25
    $region24: #{tpu_custom_call.1} parent=1 // pred_region
      _
    $region25: #{tpu_custom_call.1} parent=1 // pred_fallthru
      _
    // Predicated region
    $region26: #{tpu_custom_call.1} parent=1 // pred_check
      _
    $region27: #{tpu_custom_call.1} parent=1 // pred_check_branch
      %71 = sbr.rel (0) target = $region29
    $region28: #{tpu_custom_call.1} parent=1 // pred_region
      _
    $region29: #{tpu_custom_call.1} parent=1 // pred_fallthru
      _
    // Predicated region
    $region30: #{tpu_custom_call.1} parent=1 // pred_check
      _
    $region31: #{tpu_custom_call.1} parent=1 // pred_check_branch
      %73 = sbr.rel (0) target = $region33
    $region32: #{tpu_custom_call.1} parent=1 // pred_region
      _
    $region33: #{tpu_custom_call.1} parent=1 // pred_fallthru
      _
    // Predicated region
    $region34: #{tpu_custom_call.1} parent=1 // pred_check
      _
    $region35: #{tpu_custom_call.1} parent=1 // pred_check_branch
      %75 = sbr.rel (0) target = $region37
    $region36: #{tpu_custom_call.1} parent=1 // pred_region
      %77 = dma.done [#allocation3], 128
    $region37: #{tpu_custom_call.1} parent=1 // pred_fallthru
      _
    // Predicated region
    $region38: #{tpu_custom_call.1} parent=1 // pred_check
      _
    $region39: #{tpu_custom_call.1} parent=1 // pred_check_branch
      %79 = sbr.rel (0) target = $region41
    $region40: #{tpu_custom_call.1} parent=1 // pred_region
      %81 = dma.done [#allocation5], 128
    $region41: #{tpu_custom_call.1} parent=1 // pred_fallthru
      _
    // Predicated region
    $region42: #{tpu_custom_call.1} parent=1 // pred_check
      _
    $region43: #{tpu_custom_call.1} parent=1 // pred_check_branch
      %83 = sbr.rel (0) target = $region45
    $region44: #{tpu_custom_call.1} parent=1 // pred_region
      %85 = dma.done [#allocation5], 512
    $region45: #{tpu_custom_call.1} parent=1 // pred_fallthru
      _
    // Predicated region
    $region46: #{tpu_custom_call.1} parent=1 // pred_check
      _
    $region47: #{tpu_custom_call.1} parent=1 // pred_check_branch
      %87 = sbr.rel (0) target = $region49
    $region48: #{tpu_custom_call.1} parent=1 // pred_region
      %89 = dma.done [#allocation8], 4096
    $region49: #{tpu_custom_call.1} parent=1 // pred_fallthru
      _
    %v91 = vld [vmem:[#allocation2] sm:$0xf]
    %v92 = vld [vmem:[#allocation2 + $0x4] sm:$0xf]
    %v93 = vld [vmem:[#allocation6] sm:$0xff]
    %v94 = vld [vmem:[#allocation6 + $0x8] sm:$0xff]
    %v95 = vld [vmem:[#allocation6 + $0x10] sm:$0xff]
    %v96 = vld [vmem:[#allocation6 + $0x18] sm:$0xff]
    %v97 = vld [vmem:[%s3] sm:$0x3]
    %v99 = vperm.slane %v97, 0
    %v100 = vperm.slane %v97, 1
    %v105 = vunpack.c.l.b16 %v91
    %v106 = vunpack.c.l.b16 %v92
    %v107 = vpack.c.b16 %v106, %v105
    %v112 = vunpack.c.l.b16 %v93
    %v113 = vunpack.c.h.b16 %v93
    %v114 = vunpack.c.l.b16 %v94
    %v115 = vunpack.c.h.b16 %v94
    %v116 = vunpack.c.l.b16 %v95
    %v117 = vunpack.c.h.b16 %v95
    %v118 = vunpack.c.l.b16 %v96
    %v119 = vunpack.c.h.b16 %v96
    %v120 = vpack.c.b16 %v114, %v112
    %v121 = vpack.c.b16 %v115, %v113
    %v122 = vpack.c.b16 %v118, %v116
    %v123 = vpack.c.b16 %v119, %v117
    %vm128 = vcmask 261120
    %v130 = vsel %vm128, %v107, 0
    %132 = vmatpush.bf16.msra.mxu0 0
    %133 = vmatpush.bf16.msra.mxu0 0
    %134 = vmatpush.bf16.msra.mxu0 0
    %135 = vmatpush.bf16.msra.mxu0 0
    %136 = vmatpush.bf16.msra.mxu0 0
    %137 = vmatpush.bf16.msra.mxu0 0
    %138 = vmatpush.bf16.msra.mxu0 %v122
    %139 = vmatpush.bf16.msra.mxu0 %v120
    %140 = vmatmul.bf16.gmra.mxu0 %v130
    %v141 = vpop.f32.mrf.mxu0
    %v142 = vadd.f32 %v99, %v141
    %v143 = vpop.f32.mrf.mxu0
    %v144 = vadd.f32 %v99, %v143
    %145 = vdwg.mxu0
    %146 = vmatpush.bf16.msra.mxu0 0
    %147 = vmatpush.bf16.msra.mxu0 0
    %148 = vmatpush.bf16.msra.mxu0 0
    %149 = vmatpush.bf16.msra.mxu0 0
    %150 = vmatpush.bf16.msra.mxu0 0
    %151 = vmatpush.bf16.msra.mxu0 0
    %152 = vmatpush.bf16.msra.mxu0 %v123
    %153 = vmatpush.bf16.msra.mxu0 %v121
    %154 = vmatmul.bf16.gmra.mxu0 %v130
    %v155 = vpop.f32.mrf.mxu0
    %v156 = vadd.f32 %v100, %v155
    %v157 = vpop.f32.mrf.mxu0
    %v158 = vadd.f32 %v100, %v157
    %159 = vdwg.mxu0
    %v160 = vmax.f32 %v142, 0.0
    %v161 = vmax.f32 %v156, 0.0
    %v162 = vmax.f32 %v144, 0.0
    %v163 = vmax.f32 %v158, 0.0
    %v164 = vpack.c.bf16 %v162, %v160
    %v165 = vpack.c.bf16 %v163, %v161
    %v166 = vld [vmem:[#allocation7] sm:$0xff]
    %v167 = vld [vmem:[#allocation7 + $0x8] sm:$0xff]
    %v168 = vld [vmem:[#allocation7 + $0x10] sm:$0xff]
    %v169 = vld [vmem:[#allocation7 + $0x18] sm:$0xff]
    %v170 = vld [vmem:[#allocation7 + $0x20] sm:$0xff]
    %v171 = vld [vmem:[#allocation7 + $0x28] sm:$0xff]
    %v172 = vld [vmem:[#allocation7 + $0x30] sm:$0xff]
    %v173 = vld [vmem:[#allocation7 + $0x38] sm:$0xff]
    %v174 = vld [vmem:[#allocation7 + $0x40] sm:$0xff]
    %v175 = vld [vmem:[#allocation7 + $0x48] sm:$0xff]
    %v176 = vld [vmem:[#allocation7 + $0x50] sm:$0xff]
    %v177 = vld [vmem:[#allocation7 + $0x58] sm:$0xff]
    %v178 = vld [vmem:[#allocation7 + $0x60] sm:$0xff]
    %v179 = vld [vmem:[#allocation7 + $0x68] sm:$0xff]
    %v180 = vld [vmem:[#allocation7 + $0x70] sm:$0xff]
    %v181 = vld [vmem:[#allocation7 + $0x78] sm:$0xff]
    %v182 = vld [vmem:[#allocation7 + $0x80] sm:$0xff]
    %v183 = vld [vmem:[#allocation7 + $0x88] sm:$0xff]
    %v184 = vld [vmem:[#allocation7 + $0x90] sm:$0xff]
    %v185 = vld [vmem:[#allocation7 + $0x98] sm:$0xff]
    %v186 = vld [vmem:[#allocation7 + $0xa0] sm:$0xff]
    %v187 = vld [vmem:[#allocation7 + $0xa8] sm:$0xff]
    %v188 = vld [vmem:[#allocation7 + $0xb0] sm:$0xff]
    %v189 = vld [vmem:[#allocation7 + $0xb8] sm:$0xff]
    %v190 = vld [vmem:[#allocation7 + $0xc0] sm:$0xff]
    %v191 = vld [vmem:[#allocation7 + $0xc8] sm:$0xff]
    %v192 = vld [vmem:[#allocation7 + $0xd0] sm:$0xff]
    %v193 = vld [vmem:[#allocation7 + $0xd8] sm:$0xff]
    %v194 = vld [vmem:[#allocation7 + $0xe0] sm:$0xff]
    %v195 = vld [vmem:[#allocation7 + $0xe8] sm:$0xff]
    %v196 = vld [vmem:[#allocation7 + $0xf0] sm:$0xff]
    %v197 = vld [vmem:[#allocation7 + $0xf8] sm:$0xff]
    %v198 = vld [vmem:[%s5] sm:$0x3]
    %v200 = vperm.slane %v198, 0
    %v201 = vperm.slane %v198, 1
    %v236 = vunpack.c.l.b16 %v166
    %v237 = vunpack.c.h.b16 %v166
    %v238 = vunpack.c.l.b16 %v167
    %v239 = vunpack.c.h.b16 %v167
    %v240 = vunpack.c.l.b16 %v168
    %v241 = vunpack.c.h.b16 %v168
    %v242 = vunpack.c.l.b16 %v169
    %v243 = vunpack.c.h.b16 %v169
    %v244 = vunpack.c.l.b16 %v170
    %v245 = vunpack.c.h.b16 %v170
    %v246 = vunpack.c.l.b16 %v171
    %v247 = vunpack.c.h.b16 %v171
    %v248 = vunpack.c.l.b16 %v172
    %v249 = vunpack.c.h.b16 %v172
    %v250 = vunpack.c.l.b16 %v173
    %v251 = vunpack.c.h.b16 %v173
    %v252 = vunpack.c.l.b16 %v174
    %v253 = vunpack.c.h.b16 %v174
    %v254 = vunpack.c.l.b16 %v175
    %v255 = vunpack.c.h.b16 %v175
    %v256 = vunpack.c.l.b16 %v176
    %v257 = vunpack.c.h.b16 %v176
    %v258 = vunpack.c.l.b16 %v177
    %v259 = vunpack.c.h.b16 %v177
    %v260 = vunpack.c.l.b16 %v178
    %v261 = vunpack.c.h.b16 %v178
    %v262 = vunpack.c.l.b16 %v179
    %v263 = vunpack.c.h.b16 %v179
    %v264 = vunpack.c.l.b16 %v180
    %v265 = vunpack.c.h.b16 %v180
    %v266 = vunpack.c.l.b16 %v181
    %v267 = vunpack.c.h.b16 %v181
    %v268 = vunpack.c.l.b16 %v182
    %v269 = vunpack.c.h.b16 %v182
    %v270 = vunpack.c.l.b16 %v183
    %v271 = vunpack.c.h.b16 %v183
    %v272 = vunpack.c.l.b16 %v184
    %v273 = vunpack.c.h.b16 %v184
    %v274 = vunpack.c.l.b16 %v185
    %v275 = vunpack.c.h.b16 %v185
    %v276 = vunpack.c.l.b16 %v186
    %v277 = vunpack.c.h.b16 %v186
    %v278 = vunpack.c.l.b16 %v187
    %v279 = vunpack.c.h.b16 %v187
    %v280 = vunpack.c.l.b16 %v188
    %v281 = vunpack.c.h.b16 %v188
    %v282 = vunpack.c.l.b16 %v189
    %v283 = vunpack.c.h.b16 %v189
    %v284 = vunpack.c.l.b16 %v190
    %v285 = vunpack.c.h.b16 %v190
    %v286 = vunpack.c.l.b16 %v191
    %v287 = vunpack.c.h.b16 %v191
    %v288 = vunpack.c.l.b16 %v192
    %v289 = vunpack.c.h.b16 %v192
    %v290 = vunpack.c.l.b16 %v193
    %v291 = vunpack.c.h.b16 %v193
    %v292 = vunpack.c.l.b16 %v194
    %v293 = vunpack.c.h.b16 %v194
    %v294 = vunpack.c.l.b16 %v195
    %v295 = vunpack.c.h.b16 %v195
    %v296 = vunpack.c.l.b16 %v196
    %v297 = vunpack.c.h.b16 %v196
    %v298 = vunpack.c.l.b16 %v197
    %v299 = vunpack.c.h.b16 %v197
    %v300 = vpack.c.b16 %v238, %v236
    %v301 = vpack.c.b16 %v239, %v237
    %v302 = vpack.c.b16 %v242, %v240
    %v303 = vpack.c.b16 %v243, %v241
    %v304 = vpack.c.b16 %v246, %v244
    %v305 = vpack.c.b16 %v247, %v245
    %v306 = vpack.c.b16 %v250, %v248
    %v307 = vpack.c.b16 %v251, %v249
    %v308 = vpack.c.b16 %v254, %v252
    %v309 = vpack.c.b16 %v255, %v253
    %v310 = vpack.c.b16 %v258, %v256
    %v311 = vpack.c.b16 %v259, %v257
    %v312 = vpack.c.b16 %v262, %v260
    %v313 = vpack.c.b16 %v263, %v261
    %v314 = vpack.c.b16 %v266, %v264
    %v315 = vpack.c.b16 %v267, %v265
    %v316 = vpack.c.b16 %v270, %v268
    %v317 = vpack.c.b16 %v271, %v269
    %v318 = vpack.c.b16 %v274, %v272
    %v319 = vpack.c.b16 %v275, %v273
    %v320 = vpack.c.b16 %v278, %v276
    %v321 = vpack.c.b16 %v279, %v277
    %v322 = vpack.c.b16 %v282, %v280
    %v323 = vpack.c.b16 %v283, %v281
    %v324 = vpack.c.b16 %v286, %v284
    %v325 = vpack.c.b16 %v287, %v285
    %v326 = vpack.c.b16 %v290, %v288
    %v327 = vpack.c.b16 %v291, %v289
    %v328 = vpack.c.b16 %v294, %v292
    %v329 = vpack.c.b16 %v295, %v293
    %v330 = vpack.c.b16 %v298, %v296
    %v331 = vpack.c.b16 %v299, %v297
    %364 = vmatpush.bf16.msra.mxu0 %v314
    %365 = vmatpush.bf16.msra.mxu0 %v312
    %366 = vmatpush.bf16.msra.mxu0 %v310
    %367 = vmatpush.bf16.msra.mxu0 %v308
    %368 = vmatpush.bf16.msra.mxu0 %v306
    %369 = vmatpush.bf16.msra.mxu0 %v304
    %370 = vmatpush.bf16.msra.mxu0 %v302
    %371 = vmatpush.bf16.msra.mxu0 %v300
    %372 = vmatmul.bf16.gmra.mxu0 %v164
    %v373 = vpop.f32.mrf.mxu0
    %v374 = vadd.f32 %v200, %v373
    %v375 = vpop.f32.mrf.mxu0
    %v376 = vadd.f32 %v200, %v375
    %377 = vdwg.mxu0
    %378 = vmatpush.bf16.msra.mxu0 %v330
    %379 = vmatpush.bf16.msra.mxu0 %v328
    %380 = vmatpush.bf16.msra.mxu0 %v326
    %381 = vmatpush.bf16.msra.mxu0 %v324
    %382 = vmatpush.bf16.msra.mxu0 %v322
    %383 = vmatpush.bf16.msra.mxu0 %v320
    %384 = vmatpush.bf16.msra.mxu0 %v318
    %385 = vmatpush.bf16.msra.mxu0 %v316
    %386 = vmatmul.bf16.gmra.mxu0 %v165
    %v387 = vpop.f32.mrf.mxu0
    %v388 = vadd.f32 %v374, %v387
    %v389 = vpop.f32.mrf.mxu0
    %v390 = vadd.f32 %v376, %v389
    %391 = vdwg.mxu0
    %392 = vmatpush.bf16.msra.mxu0 %v315
    %393 = vmatpush.bf16.msra.mxu0 %v313
    %394 = vmatpush.bf16.msra.mxu0 %v311
    %395 = vmatpush.bf16.msra.mxu0 %v309
    %396 = vmatpush.bf16.msra.mxu0 %v307
    %397 = vmatpush.bf16.msra.mxu0 %v305
    %398 = vmatpush.bf16.msra.mxu0 %v303
    %399 = vmatpush.bf16.msra.mxu0 %v301
    %400 = vmatmul.bf16.gmra.mxu0 %v164
    %v401 = vpop.f32.mrf.mxu0
    %v402 = vadd.f32 %v201, %v401
    %v403 = vpop.f32.mrf.mxu0
    %v404 = vadd.f32 %v201, %v403
    %405 = vdwg.mxu0
    %406 = vmatpush.bf16.msra.mxu0 %v331
    %407 = vmatpush.bf16.msra.mxu0 %v329
    %408 = vmatpush.bf16.msra.mxu0 %v327
    %409 = vmatpush.bf16.msra.mxu0 %v325
    %410 = vmatpush.bf16.msra.mxu0 %v323
    %411 = vmatpush.bf16.msra.mxu0 %v321
    %412 = vmatpush.bf16.msra.mxu0 %v319
    %413 = vmatpush.bf16.msra.mxu0 %v317
    %414 = vmatmul.bf16.gmra.mxu0 %v165
    %v415 = vpop.f32.mrf.mxu0
    %v416 = vadd.f32 %v402, %v415
    %v417 = vpop.f32.mrf.mxu0
    %v418 = vadd.f32 %v404, %v417
    %419 = vdwg.mxu0
    %v420 = vmax.f32 %v388, 0.0
    %v421 = vmax.f32 %v416, 0.0
    %v422 = vmax.f32 %v390, 0.0
    %v423 = vmax.f32 %v418, 0.0
    %v424 = vld [vmem:[%s6] sm:$0xff]
    %v425 = vld [vmem:[%s6 + $0x8] sm:$0xff]
    %v426 = vpack.c.bf16 %v422, %v420
    %v427 = vpack.c.bf16 %v423, %v421
    %v428 = vld [vmem:[%s7] sm:$0xff]
    %v429 = vld [vmem:[%s7 + $0x8] sm:$0xff]
    %431 = vset.pattern.permute.xlu0 0
    %432 = vperm.xlu0 %431, %v428
    %v433 = vpop.permute.xlu0 %432
    %436 = vset.pattern.permute.xlu0 0
    %437 = vperm.xlu0 %436, %v429
    %v438 = vpop.permute.xlu0 %437
    %v442 = vunpack.c.l.b16 %v424
    %v443 = vunpack.c.h.b16 %v424
    %v444 = vunpack.c.l.b16 %v425
    %v445 = vunpack.c.h.b16 %v425
    %v446 = vpack.c.b16 %v444, %v442
    %v447 = vpack.c.b16 %v445, %v443
    %450 = vmatpush.bf16.xpose.msra.mxu0 0
    %451 = vmatpush.bf16.xpose.msra.mxu0 0
    %452 = vmatpush.bf16.xpose.msra.mxu0 0
    %453 = vmatpush.bf16.xpose.msra.mxu0 0
    %454 = vmatpush.bf16.xpose.msra.mxu0 0
    %455 = vmatpush.bf16.xpose.msra.mxu0 0
    %456 = vmatpush.bf16.xpose.msra.mxu0 0
    %457 = vmatpush.bf16.xpose.msra.mxu0 %v426
    %458 = vmatmul.bf16.gmra.mxu0 %v446
    %v459 = vpop.f32.mrf.mxu0
    %v460 = vadd.f32 %v433, %v459
    %v461 = vpop.f32.mrf.mxu0
    %v462 = vadd.f32 %v438, %v461
    %463 = vdwg.mxu0
    %464 = vmatpush.bf16.xpose.msra.mxu0 0
    %465 = vmatpush.bf16.xpose.msra.mxu0 0
    %466 = vmatpush.bf16.xpose.msra.mxu0 0
    %467 = vmatpush.bf16.xpose.msra.mxu0 0
    %468 = vmatpush.bf16.xpose.msra.mxu0 0
    %469 = vmatpush.bf16.xpose.msra.mxu0 0
    %470 = vmatpush.bf16.xpose.msra.mxu0 0
    %471 = vmatpush.bf16.xpose.msra.mxu0 %v427
    %472 = vmatmul.bf16.gmra.mxu0 %v447
    %v473 = vpop.f32.mrf.mxu0
    %v474 = vadd.f32 %v460, %v473
    %v475 = vpop.f32.mrf.mxu0
    %v476 = vadd.f32 %v462, %v475
    %477 = vdwg.mxu0
    %v478 = vmax.f32 %v474, -9.0
    %v479 = vmin.f32 %v478, 9.0
    %v480 = vmax.f32 %v476, -5.0
    %v481 = vmin.f32 %v480, 2.0
    %v482 = vmul.f32 %v481, 1.442695
    %v483 = vpow.pop %v482
    %v484 = vld [vmem:[#allocation4] sm:$0x3f]
    %v485 = vmul.f32 %v483, %v484
    %v486 = vadd.f32 %v479, %v485
    %v487 = vtanh.pop %v486
    %v488 = vmul.f32 %v484, %v484
    %v489 = vmul.f32 %v488, -0.5
    %v490 = vsub.f32 %v489, %v481
    %v491 = vsub.f32 %v490, 0.9189385
    %v492 = vand.u32 2147483647, %v486
    %v493 = vsub.f32 0.6931472, %v492
    %v494 = vmul.f32 %v492, -2.0
    %v495 = vmul.f32 %v494, 1.442695
    %v496 = vpow.pop %v495
    %v497 = vadd.f32 %v496, 1.0
    %v498 = vlog2.pop %v497
    %v499 = vmul.f32 %v498, 0.6931472
    %v500 = vsub.f32 %v493, %v499
    %v501 = vmul.f32 %v500, 2.0
    %v502 = vsub.f32 %v491, %v501
    %vm503 = vcmask 130048
    %504 = vst.msk [vmem:[%s8] sm:$0xff] %vm503, 0.0
    %505 = vst.msk [vmem:[%s8 + $0x8] sm:$0xff] %vm503, 0.0
    %506 = vst.msk [vmem:[%s8 + $0x10] sm:$0xff] %vm503, 0.0
    %vm507 = vcmask 128000
    %508 = vst.msk [vmem:[%s8] sm:$0x3f] %vm507, %v487
    %v509 = vtanh.pop %v479
    %510 = vst.msk [vmem:[%s8 + $0x8] sm:$0x3f] %vm507, %v509
    %v511 = vsel %vm507, %v502, 0.0
    %v512 = vrot.slane %v511, 4
    %v513 = vadd.f32 %v511, %v512
    %v514 = vrot.slane %v513, 2
    %v515 = vadd.f32 %v513, %v514
    %v516 = vrot.slane %v515, 1
    %v517 = vadd.f32 %v515, %v516
    %vm518 = vcmask 122880
    %519 = vst.msk [vmem:[%s8 + $0x10] sm:$0x1] %vm518, %v517
    // Predicated region
    $region50: #{tpu_custom_call.1} parent=1 // pred_check
      _
    $region51: #{tpu_custom_call.1} parent=1 // pred_check_branch
      %521 = sbr.rel (0) target = $region53
    $region52: #{tpu_custom_call.1} parent=1 // pred_region
      _
    $region53: #{tpu_custom_call.1} parent=1 // pred_fallthru
      _
    // Predicated region
    $region54: #{tpu_custom_call.1} parent=1 // pred_check
      _
    $region55: #{tpu_custom_call.1} parent=1 // pred_check_branch
      %523 = sbr.rel (0) target = $region57
    $region56: #{tpu_custom_call.1} parent=1 // pred_region
      _
    $region57: #{tpu_custom_call.1} parent=1 // pred_fallthru
      _
    %524 = vsyncpa [#allocation3], 1
    %525 = vsyncpa [#allocation5], 1
    %526 = vsyncpa [#allocation8], 1

</llo_original>
